<compile_context>
chip_gen: v6e
topology: v6e:2x2x1
jax: 0.10.0
libtpu: 0.0.40
codegen_flags: <defaults>
</compile_context>

<pallas_src>
import functools

import jax
import jax.numpy as jnp
from jax import lax
from jax.experimental import pallas as pl
from jax.experimental.pallas import tpu as pltpu

BN_EPS = 1e-5


def _round_up(x: int, m: int) -> int:
    return ((x + m - 1) // m) * m


@functools.lru_cache(maxsize=None)
def _vmem_budget_bytes() -> int:
    """Scoped-VMEM budget: physical capacity minus headroom, capped at 96 MiB.
    v7x (64 MiB physical) -> 48 MiB; v5e/v6e (128 MiB) -> 96 MiB."""
    try:
        cap = int(pltpu.get_tpu_info().vmem_capacity_bytes)
    except Exception:
        cap = 64 << 20                       # conservative (v7x) fallback
    return max(32 << 20, min(cap - (16 << 20), 96 << 20))


def _max_block_elems() -> int:
    # Pass-2 peak VMEM ~ (in + out) double-buffered + ~3 f32 temps ~ 7 f32 blocks.
    return max(8 * 128, _vmem_budget_bytes() // (7 * 4))


def _spatial_tiling(hw: int, c: int):
    """Pick the lane tile T (multiple of 128) and padded spatial extent HWp.
    Prefer a divisor of hw (zero padding); otherwise pad so blocks never
    exceed the VMEM-derived element cap."""
    max_t = max(128, (_max_block_elems() // max(c, 1)) // 128 * 128)
    if hw <= max_t:
        t = _round_up(max(hw, 1), 128)
        return t, t
    t = max_t
    while t >= 128:
        if hw % t == 0:
            return t, hw
        t -= 128
    return max_t, _round_up(hw, max_t)


def _stats_kernel(x_ref, off_ref, sum_ref, ssq_ref):
    """Per-(batch, channel) partial sums of (x - off) and (x - off)^2.

    x_ref: (1, C, T) native dtype.  off_ref: (1, C, 1) f32 resident.
    sum_ref/ssq_ref: (1, C, 1) f32 blocks of the (N, C, 1) partial outputs,
    resident across the spatial ("arbitrary") grid axis.
    """
    @pl.when(pl.program_id(1) == 0)
    def _():
        sum_ref[...] = jnp.zeros(sum_ref.shape, sum_ref.dtype)
        ssq_ref[...] = jnp.zeros(ssq_ref.shape, ssq_ref.dtype)

    x = x_ref[...].astype(jnp.float32)       # HBM streams native dtype; cast in VMEM
    xc = x - off_ref[...]                    # shifted accumulation (stable variance)
    sum_ref[...] += jnp.sum(xc, axis=2, keepdims=True)
    ssq_ref[...] += jnp.sum(xc * xc, axis=2, keepdims=True)


def _apply_kernel(x_ref, s_ref, q_ref, off_ref, g_ref, b_ref, o_ref, *, m, pad_cnt):
    """out = sigmoid(x*scale_c + shift_c) * x, per channel.

    scale/shift are re-derived each step from the tiny resident stats inputs
    (O(N*C) work hidden under the HBM stream) so no XLA epilogue is needed
    between the two pallas_calls.
    """
    s_tot = jnp.sum(s_ref[...], axis=0, keepdims=True)      # (1, C, 1)
    q_tot = jnp.sum(q_ref[...], axis=0, keepdims=True)      # (1, C, 1)
    off = off_ref[...]
    # Spatial zero-padding contributed (-off) to sum and off^2 to sumsq: undo.
    s_tot = s_tot + pad_cnt * off
    q_tot = q_tot - pad_cnt * off * off

    mean_c = s_tot * (1.0 / m)
    var = jnp.maximum(q_tot * (1.0 / m) - mean_c * mean_c, 0.0)
    inv_std = lax.rsqrt(var + BN_EPS)

    g = g_ref[...]
    absg = jnp.abs(g)
    w_bn = absg / jnp.sum(absg)              # NaN if sum == 0, same as PyTorch
    mean = off + mean_c
    scale = inv_std * g * w_bn               # (1, C, 1)
    shift = (b_ref[...] - mean * inv_std * g) * w_bn

    x = x_ref[...].astype(jnp.float32)       # (1, C, T)
    y = x * scale + shift                    # lane broadcast of (1, C, 1): cheap
    o_ref[...] = (jax.nn.sigmoid(y) * x).astype(o_ref.dtype)


def channel_att(x_nchw, gamma, beta, *, donate_x: bool = False):
    """x_nchw: (N, C, H, W); gamma/beta: (C,).  Returns (N, C, H, W), x.dtype."""
    N, C, H, W = x_nchw.shape
    HW = H * W
    M = N * HW

    T, HWp = _spatial_tiling(HW, C)
    x3 = x_nchw.reshape(N, C, HW)            # free view, native dtype (no cast)
    if HWp != HW:
        x3 = jnp.pad(x3, ((0, 0), (0, 0), (0, HWp - HW)))
    grid = (N, HWp // T)
    vmem_limit = _vmem_budget_bytes()

    # Tiny per-channel inputs (f32): variance shift + BN affine params.
    off = x_nchw[0, :, 0, 0].astype(jnp.float32).reshape(1, C, 1)
    g = gamma.astype(jnp.float32).reshape(1, C, 1)
    b = beta.astype(jnp.float32).reshape(1, C, 1)

    x_spec = pl.BlockSpec((1, C, T), lambda i, t: (i, 0, t))
    small_spec = pl.BlockSpec((1, C, 1), lambda i, t: (0, 0, 0))
    part_out_spec = pl.BlockSpec((1, C, 1), lambda i, t: (i, 0, 0))
    part_in_spec = pl.BlockSpec((N, C, 1), lambda i, t: (0, 0, 0))

    # ---- pass 1: per-batch partial (shifted) sum / sum-of-squares ----
    s, q = pl.pallas_call(
        _stats_kernel,
        out_shape=(jax.ShapeDtypeStruct((N, C, 1), jnp.float32),
                   jax.ShapeDtypeStruct((N, C, 1), jnp.float32)),
        grid=grid,
        in_specs=[x_spec, small_spec],
        out_specs=(part_out_spec, part_out_spec),
        compiler_params=pltpu.CompilerParams(
            dimension_semantics=("parallel", "arbitrary"),
            vmem_limit_bytes=vmem_limit),
    )(x3, off)

    # ---- pass 2: fused BN + |gamma| weighting + sigmoid gate (elementwise) ----
    pad_cnt = float(N * (HWp - HW))
    apply_kernel = functools.partial(_apply_kernel, m=float(M), pad_cnt=pad_cnt)
    out3 = pl.pallas_call(
        apply_kernel,
        out_shape=jax.ShapeDtypeStruct((N, C, HWp), x_nchw.dtype),
        grid=grid,
        in_specs=[x_spec, part_in_spec, part_in_spec,
                  small_spec, small_spec, small_spec],
        out_specs=x_spec,
        compiler_params=pltpu.CompilerParams(
            dimension_semantics=("parallel", "parallel"),
            vmem_limit_bytes=vmem_limit),
        input_output_aliases=({0: 0} if donate_x else {}),
    )(x3, s, q, off, g, b)

    if HWp != HW:
        out3 = out3[:, :, :HW]
    return out3.reshape(N, C, H, W)


def channel_att_ref(x_nchw, gamma, beta):
    """Pure-JAX reference mirroring the PyTorch forward (training-mode BN)."""
    xf = x_nchw.astype(jnp.float32)
    mean = jnp.mean(xf, axis=(0, 2, 3), keepdims=True)
    var = jnp.mean((xf - mean) ** 2, axis=(0, 2, 3), keepdims=True)
    g = gamma.astype(jnp.float32).reshape(1, -1, 1, 1)
    b = beta.astype(jnp.float32).reshape(1, -1, 1, 1)
    y = (xf - mean) * lax.rsqrt(var + BN_EPS) * g + b
    w = jnp.abs(gamma) / jnp.sum(jnp.abs(gamma))
    y = y * w.reshape(1, -1, 1, 1)
    return (jax.nn.sigmoid(y) * xf).astype(x_nchw.dtype)


# TODO(synk): BatchNorm2d running-stats (running_mean/var momentum updates) are
# training-side buffer mutation, not part of the forward math; not implemented.

if __name__ == "__main__":
    key = jax.random.PRNGKey(0)
    kx, kg, kb = jax.random.split(key, 3)

    N, C, H, W = 2, 4, 16, 16
    x = jax.random.normal(kx, (N, C, H, W), dtype=jnp.float32)
    gamma = 0.5 + jax.random.uniform(kg, (C,), dtype=jnp.float32)
    beta = 0.1 * jax.random.normal(kb, (C,), dtype=jnp.float32)

    out = jax.block_until_ready(channel_att(x, gamma, beta))
    ref = jax.block_until_ready(channel_att_ref(x, gamma, beta))

    assert out.shape == (N, C, H, W)
    assert out.dtype == x.dtype
    assert jnp.allclose(out, ref, atol=1e-5, rtol=1e-5), "mismatch vs reference"
    print("KERNEL_OK")
</pallas_src>

<mosaic_0001>
module attributes {stable_mosaic.version = 11 : i64} {
  func.func @_stats_kernel(%arg0: i32, %arg1: i32, %arg2: memref<1x4x256xf32, #tpu.memory_space<vmem>>, %arg3: memref<1x4x1xf32, #tpu.memory_space<vmem>>, %arg4: memref<1x4x1xf32, #tpu.memory_space<vmem>>, %arg5: memref<1x4x1xf32, #tpu.memory_space<vmem>>) attributes {dimension_semantics = [#tpu.dimension_semantics<parallel>, #tpu.dimension_semantics<arbitrary>], iteration_bounds = array<i64: 2, 1>, scalar_prefetch = 0 : i64, scratch_operands = 0 : i64, tpu.core_type = #tpu.core_type<tc>, window_params = [{transform_indices = @transform_0, window_bounds = array<i64: 1, 4, 256>}, {pipeline_mode = #tpu.pipeline_mode<synchronous>, transform_indices = @transform_1, window_bounds = array<i64: 1, 4, 1>}, {transform_indices = @transform_2, window_bounds = array<i64: 1, 4, 1>}, {transform_indices = @transform_3, window_bounds = array<i64: 1, 4, 1>}]} {
    %c0_i32 = arith.constant 0 : i32
    %0 = arith.cmpi eq, %arg1, %c0_i32 : i32
    %1 = arith.extui %0 : i1 to i32
    %c0_i32_0 = arith.constant 0 : i32
    %2 = arith.cmpi ne, %1, %c0_i32_0 : i32
    scf.if %2 {
      %cst_19 = arith.constant 0.000000e+00 : f32
      %18 = vector.broadcast %cst_19 : f32 to vector<1x4x1xf32>
      %c0_20 = arith.constant 0 : index
      %c0_21 = arith.constant 0 : index
      %c0_22 = arith.constant 0 : index
      %19 = vector.load %arg4[%c0_20, %c0_21, %c0_22] : memref<1x4x1xf32, #tpu.memory_space<vmem>>, vector<1x4x1xf32>
      tpu.vector_store %arg4[%c0_20, %c0_21, %c0_22], %18 {strides = array<i32>} : memref<1x4x1xf32, #tpu.memory_space<vmem>>, vector<1x4x1xf32>,
      %cst_23 = arith.constant 0.000000e+00 : f32
      %20 = vector.broadcast %cst_23 : f32 to vector<1x4x1xf32>
      %c0_24 = arith.constant 0 : index
      %c0_25 = arith.constant 0 : index
      %c0_26 = arith.constant 0 : index
      %21 = vector.load %arg5[%c0_24, %c0_25, %c0_26] : memref<1x4x1xf32, #tpu.memory_space<vmem>>, vector<1x4x1xf32>
      tpu.vector_store %arg5[%c0_24, %c0_25, %c0_26], %20 {strides = array<i32>} : memref<1x4x1xf32, #tpu.memory_space<vmem>>, vector<1x4x1xf32>,
    } else {
    }
    %c0 = arith.constant 0 : index
    %c0_1 = arith.constant 0 : index
    %c0_2 = arith.constant 0 : index
    %3 = vector.load %arg2[%c0, %c0_1, %c0_2] : memref<1x4x256xf32, #tpu.memory_space<vmem>>, vector<1x4x256xf32>
    %c0_3 = arith.constant 0 : index
    %c0_4 = arith.constant 0 : index
    %c0_5 = arith.constant 0 : index
    %4 = vector.load %arg3[%c0_3, %c0_4, %c0_5] : memref<1x4x1xf32, #tpu.memory_space<vmem>>, vector<1x4x1xf32>
    %5 = vector.broadcast %4 : vector<1x4x1xf32> to vector<1x4x256xf32>
    %6 = arith.subf %3, %5 : vector<1x4x256xf32>
    %c0_6 = arith.constant 0 : index
    %c0_7 = arith.constant 0 : index
    %c0_8 = arith.constant 0 : index
    %7 = vector.load %arg4[%c0_6, %c0_7, %c0_8] : memref<1x4x1xf32, #tpu.memory_space<vmem>>, vector<1x4x1xf32>
    %cst = arith.constant dense<0.000000e+00> : vector<1x4xf32>
    %8 = vector.multi_reduction <add>, %6, %cst [2] : vector<1x4x256xf32> to vector<1x4xf32>
    %9 = vector.shape_cast %8 : vector<1x4xf32> to vector<1x4x1xf32>
    %10 = arith.addf %7, %9 : vector<1x4x1xf32>
    %c0_9 = arith.constant 0 : index
    %c0_10 = arith.constant 0 : index
    %c0_11 = arith.constant 0 : index
    %11 = vector.load %arg4[%c0_9, %c0_10, %c0_11] : memref<1x4x1xf32, #tpu.memory_space<vmem>>, vector<1x4x1xf32>
    tpu.vector_store %arg4[%c0_9, %c0_10, %c0_11], %10 {strides = array<i32>} : memref<1x4x1xf32, #tpu.memory_space<vmem>>, vector<1x4x1xf32>,
    %c0_12 = arith.constant 0 : index
    %c0_13 = arith.constant 0 : index
    %c0_14 = arith.constant 0 : index
    %12 = vector.load %arg5[%c0_12, %c0_13, %c0_14] : memref<1x4x1xf32, #tpu.memory_space<vmem>>, vector<1x4x1xf32>
    %13 = arith.mulf %6, %6 : vector<1x4x256xf32>
    %cst_15 = arith.constant dense<0.000000e+00> : vector<1x4xf32>
    %14 = vector.multi_reduction <add>, %13, %cst_15 [2] : vector<1x4x256xf32> to vector<1x4xf32>
    %15 = vector.shape_cast %14 : vector<1x4xf32> to vector<1x4x1xf32>
    %16 = arith.addf %12, %15 : vector<1x4x1xf32>
    %c0_16 = arith.constant 0 : index
    %c0_17 = arith.constant 0 : index
    %c0_18 = arith.constant 0 : index
    %17 = vector.load %arg5[%c0_16, %c0_17, %c0_18] : memref<1x4x1xf32, #tpu.memory_space<vmem>>, vector<1x4x1xf32>
    tpu.vector_store %arg5[%c0_16, %c0_17, %c0_18], %16 {strides = array<i32>} : memref<1x4x1xf32, #tpu.memory_space<vmem>>, vector<1x4x1xf32>,
    return
  }
  func.func @transform_0(%arg0: i32, %arg1: i32) -> (i32, i32, i32) {
    %c0_i32 = arith.constant 0 : i32
    %c0_i32_0 = arith.constant 0 : i32
    return %arg0, %c0_i32, %arg1 : i32, i32, i32
  }
  func.func @transform_1(%arg0: i32, %arg1: i32) -> (i32, i32, i32) {
    %c0_i32 = arith.constant 0 : i32
    %c0_i32_0 = arith.constant 0 : i32
    %c0_i32_1 = arith.constant 0 : i32
    %c0_i32_2 = arith.constant 0 : i32
    return %c0_i32, %c0_i32_0, %c0_i32_1 : i32, i32, i32
  }
  func.func @transform_2(%arg0: i32, %arg1: i32) -> (i32, i32, i32) {
    %c0_i32 = arith.constant 0 : i32
    %c0_i32_0 = arith.constant 0 : i32
    %c0_i32_1 = arith.constant 0 : i32
    return %arg0, %c0_i32, %c0_i32_0 : i32, i32, i32
  }
  func.func @transform_3(%arg0: i32, %arg1: i32) -> (i32, i32, i32) {
    %c0_i32 = arith.constant 0 : i32
    %c0_i32_0 = arith.constant 0 : i32
    %c0_i32_1 = arith.constant 0 : i32
    return %arg0, %c0_i32, %c0_i32_0 : i32, i32, i32
  }
}

</mosaic_0001>

<llo_original>
// kernel: tpu_custom_call.1
$region0: #{tpu_custom_call.1}
  #allocation0 [shape = 'u32[]', space=smem, size = 0x4, offset = 0x4, fixed_abs, tag = 'smem constant byte address 0x4 - core index']
  #allocation1 [shape = 'u32[144,128]{1,0:T(1,128)}', space=vmem, size = 0x12000, scoped, tag = 'internal scratch']
  %s0 = inlined_call_operand.hbm [shape: f32[2,4,256], index: 0, kind: input, shape index: {}]
  %s1 = inlined_call_operand.vmem [shape: f32[1,4,1], index: 1, kind: input, shape index: {}]
  %s2 = inlined_call_operand.vmem [shape: f32[2,4,1], index: 2, kind: output, shape index: {0}]
  %s3 = inlined_call_operand.vmem [shape: f32[2,4,1], index: 3, kind: output, shape index: {1}]
  %4 = xla_tuple %s2, %s3
  %s5 = sld [smem:[#allocation0]]
  $region57: #{tpu_custom_call.1} parent=0
    _
  %s7 = ssub.s32 1, %s5
  %s8 = scalar_select 0, %s7, %s5
  $region1: #{tpu_custom_call.1} parent=0
    #allocation2 [shape = 'u8[8192]{0}', space=vmem, size = 0x2000, scoped, tag = 'input window, operand 0']
    #allocation3 [shape = 's32[2]{0}', space=sflag, size = 0x8, scoped, tag = 'scoped memory for tpu_custom_call.1']
    %9 = vsyncpa [#allocation3], 0
    %s10 = scalar_lea.sflag [#allocation3], 1
    %11 = vsyncpa %s10, 0
    loop: start=0, step=1, limit=4
    $region2: #{tpu_custom_call.1} parent=1 // loop_pre_header
      _
    $region3: #{tpu_custom_call.1} parent=1 // loop_header
      %s13 = sphi 0, %s17
      %p14 = scmp.ge.s32.totalorder %s13, 4
      %s20 = sphi 0, %s32
      %s21 = sphi 0, %s28
      %s22 = sphi 0, %s20
      %s23 = sphi 0, %s21
      %s24 = sphi 0, %s22
      %s25 = sphi 0, %s23
      %s37 = sphi 0, %s39
      %s40 = sphi 0, %s37
      %s41 = sphi 0, %s40
      %s57 = sphi 0, %s41
      %s61 = sphi 0, %s61
      %s63 = sphi 0, %s61
      %s64 = sphi 0, %s63
      %s78 = sphi 0, %s64
      %s84 = sphi 0, %s86
      %s87 = sphi 0, %s84
      %s88 = sphi 0, %s87
      %s104 = sphi 0, %s88
      %s110 = sphi 0, %s112
      %s113 = sphi 0, %s110
      %s114 = sphi 0, %s113
      %s130 = sphi 0, %s114
    $region4: #{tpu_custom_call.1} parent=1 // loop_header_branch
      %16 = sbr.rel (%p14) target = $region8
    $region5: #{tpu_custom_call.1} parent=1 // loop_body
      %s18 = ssub.s32 %s13, 1
      %s19 = ssub.s32 %s13, 2
      %s26 = sadd.s32 1, %s21
      %p27 = scmp.ge.s32.totalorder %s26, 1
      %s28 = scalar_select %p27, 0, %s26
      %s29 = sadd.s32 1, %s20
      %s30 = scalar_select %p27, %s29, %s20
      %p31 = scmp.ge.s32.totalorder %s30, 2
      %s32 = scalar_select %p31, 0, %s30
      %s33 = ssub.s32 %s20, %s32
      %s34 = ssub.s32 %s21, %s28
      %s35 = sor.u32 %s33, %s34
      %p36 = scmp.eq.s32.totalorder %s35, 0
      %s38 = sadd.s32 %s37, 1
      %s39 = scalar_select %p36, %s37, %s38
      %p42 = pneg %p36
      %p43 = scmp.eq.s32.totalorder %s13, 1
      %p44 = por %p42, %p43
      %p45 = scmp.ne.s32.totalorder %s37, %s40
      %p46 = scmp.eq.s32.totalorder %s13, 0
      %p47 = por %p45, %p46
      %p48 = scmp.ne.s32.totalorder %s37, %s40
      %p49 = scmp.eq.s32.totalorder %s18, 1
      %p50 = por %p48, %p49
      %p51 = scmp.ne.s32.totalorder %s40, %s41
      %p52 = scmp.eq.s32.totalorder %s18, 0
      %p53 = por %p51, %p52
      %p54 = scmp.ne.s32.totalorder %s40, %s41
      %p55 = scmp.eq.s32.totalorder %s19, 1
      %p56 = por %p54, %p55
      %p58 = scmp.ne.s32.totalorder %s41, %s57
      %p59 = scmp.eq.s32.totalorder %s19, 0
      %p60 = por %p58, %p59
      %s62 = sadd.s32 %s61, 1
      %p65 = scmp.eq.s32.totalorder %s13, 1
      %p66 = scmp.ne.s32.totalorder %s61, %s63
      %p67 = scmp.eq.s32.totalorder %s13, 0
      %p68 = por %p66, %p67
      %p69 = scmp.ne.s32.totalorder %s61, %s63
      %p70 = scmp.eq.s32.totalorder %s18, 1
      %p71 = por %p69, %p70
      %p72 = scmp.ne.s32.totalorder %s63, %s64
      %p73 = scmp.eq.s32.totalorder %s18, 0
      %p74 = por %p72, %p73
      %p75 = scmp.ne.s32.totalorder %s63, %s64
      %p76 = scmp.eq.s32.totalorder %s19, 1
      %p77 = por %p75, %p76
      %p79 = scmp.ne.s32.totalorder %s64, %s78
      %p80 = scmp.eq.s32.totalorder %s19, 0
      %p81 = por %p79, %p80
      %s82 = ssub.s32 %s20, %s32
      %p83 = scmp.eq.s32.totalorder %s82, 0
      %s85 = sadd.s32 %s84, 1
      %s86 = scalar_select %p83, %s84, %s85
      %p89 = pneg %p83
      %p90 = scmp.eq.s32.totalorder %s13, 1
      %p91 = por %p89, %p90
      %p92 = scmp.ne.s32.totalorder %s84, %s87
      %p93 = scmp.eq.s32.totalorder %s13, 0
      %p94 = por %p92, %p93
      %p95 = scmp.ne.s32.totalorder %s84, %s87
      %p96 = scmp.eq.s32.totalorder %s18, 1
      %p97 = por %p95, %p96
      %p98 = scmp.ne.s32.totalorder %s87, %s88
      %p99 = scmp.eq.s32.totalorder %s18, 0
      %p100 = por %p98, %p99
      %p101 = scmp.ne.s32.totalorder %s87, %s88
      %p102 = scmp.eq.s32.totalorder %s19, 1
      %p103 = por %p101, %p102
      %p105 = scmp.ne.s32.totalorder %s88, %s104
      %p106 = scmp.eq.s32.totalorder %s19, 0
      %p107 = por %p105, %p106
      %s108 = ssub.s32 %s20, %s32
      %p109 = scmp.eq.s32.totalorder %s108, 0
      %s111 = sadd.s32 %s110, 1
      %s112 = scalar_select %p109, %s110, %s111
      %p115 = pneg %p109
      %p116 = scmp.eq.s32.totalorder %s13, 1
      %p117 = por %p115, %p116
      %p118 = scmp.ne.s32.totalorder %s110, %s113
      %p119 = scmp.eq.s32.totalorder %s13, 0
      %p120 = por %p118, %p119
      %p121 = scmp.ne.s32.totalorder %s110, %s113
      %p122 = scmp.eq.s32.totalorder %s18, 1
      %p123 = por %p121, %p122
      %p124 = scmp.ne.s32.totalorder %s113, %s114
      %p125 = scmp.eq.s32.totalorder %s18, 0
      %p126 = por %p124, %p125
      %p127 = scmp.ne.s32.totalorder %s113, %s114
      %p128 = scmp.eq.s32.totalorder %s19, 1
      %p129 = por %p127, %p128
      %p131 = scmp.ne.s32.totalorder %s114, %s130
      %p132 = scmp.eq.s32.totalorder %s19, 0
      %p133 = por %p131, %p132
      %p134 = scmp.le.s32.totalorder 1, %s13
      %p135 = scmp.lt.s32.totalorder %s13, 3
      %p136 = pnand %p134, %p135
      %p137 = pneg %p136
      // Predicated region
      $region9: #{tpu_custom_call.1} parent=5 // pred_check
        _
      $region10: #{tpu_custom_call.1} parent=5 // pred_check_branch
        %139 = sbr.rel (%p136) target = $region12
      $region11: #{tpu_custom_call.1} parent=5 // pred_region
        %s140 = ssub.s32 %s13, 1
        // Predicated region
        $region13: #{tpu_custom_call.1} parent=11 // pred_check
          %p141 = pneg %p74
        $region14: #{tpu_custom_call.1} parent=11 // pred_check_branch
          %143 = sbr.rel (%p141) target = $region16
        $region15: #{tpu_custom_call.1} parent=11 // pred_region
          _
        $region16: #{tpu_custom_call.1} parent=11 // pred_fallthru
          _
      $region12: #{tpu_custom_call.1} parent=5 // pred_fallthru
        _
      %p144 = scmp.lt.s32.totalorder %s13, 2
      // Predicated region
      $region17: #{tpu_custom_call.1} parent=5 // pred_check
        %p145 = pneg %p144
      $region18: #{tpu_custom_call.1} parent=5 // pred_check_branch
        %147 = sbr.rel (%p145) target = $region20
      $region19: #{tpu_custom_call.1} parent=5 // pred_region
        // Predicated region
        $region21: #{tpu_custom_call.1} parent=19 // pred_check
          %p148 = pneg %p47
        $region22: #{tpu_custom_call.1} parent=19 // pred_check_branch
          %150 = sbr.rel (%p148) target = $region24
        $region23: #{tpu_custom_call.1} parent=19 // pred_region
          %s151 = sand.u32 %s37, 1
          %s152 = scalar_lea.sflag [#allocation3], %s151
          %s153 = sand.u32 %s37, 1
          %s154 = smul.addr %s153, 8
          %s155 = scalar_lea.vmem [#allocation2], %s154
          %s156 = smul.u32 2, %s21
          %s158 = ssub.s32 128, 128
          %159 = vsyncadd %s152, %s158
          %s160 = smul.addr %s20, 2
          %s161 = sadd.s32 %s156, %s160
          %s162 = smul.addr %s161, 64
          %s163 = scalar_lea.hbm %s0, %s162
          %s165 = sshll.u32 %s155, 4
          %s166 = int_to_ptr.vmem [resolvable:$true] %s165
          %168 = dma.hbm_to_vmem [thread:$0]  %s163, 128, %s166, %s152
        $region24: #{tpu_custom_call.1} parent=19 // pred_fallthru
          _
      $region20: #{tpu_custom_call.1} parent=5 // pred_fallthru
        _
      %p169 = scmp.le.s32.totalorder 1, %s13
      %p170 = scmp.lt.s32.totalorder %s13, 3
      %p171 = pnand %p169, %p170
      %p172 = pneg %p171
      // Predicated region
      $region25: #{tpu_custom_call.1} parent=5 // pred_check
        _
      $region26: #{tpu_custom_call.1} parent=5 // pred_check_branch
        %174 = sbr.rel (%p171) target = $region28
      $region27: #{tpu_custom_call.1} parent=5 // pred_region
        %s175 = ssub.s32 %s13, 1
        %s176 = sand.u32 %s40, 1
        %s177 = scalar_lea.sflag [#allocation3], %s176
        %s178 = sand.u32 %s40, 1
        %s179 = smul.addr %s178, 8
        %s180 = scalar_lea.vmem [#allocation2], %s179
        // Predicated region
        $region29: #{tpu_custom_call.1} parent=27 // pred_check
          %p181 = pneg %p53
        $region30: #{tpu_custom_call.1} parent=27 // pred_check_branch
          %183 = sbr.rel (%p181) target = $region32
        $region31: #{tpu_custom_call.1} parent=27 // pred_region
          %184 = dma.done %s177, 128
        $region32: #{tpu_custom_call.1} parent=27 // pred_fallthru
          _
        %s185 = sand.u32 %s40, 1
        %s186 = scalar_lea.sflag [#allocation3], %s185
        %s187 = sand.u32 %s40, 1
        %s188 = smul.addr %s187, 8
        %s189 = scalar_lea.vmem [#allocation2], %s188
        %p190 = pneg %p53
        %p191 = pneg %p50
        %p192 = pneg %p74
        %p193 = pneg %p71
        %p194 = pneg %p100
        %p195 = pneg %p97
        %p196 = scmp.lt.s32.totalorder %s22, 1
        %s197 = scalar_select %p196, %s22, 1
        %s198 = smul.addr %s197, 4
        %s199 = scalar_lea.vmem %s2, %s198
        %p200 = pneg %p126
        %p201 = pneg %p123
        %p202 = scmp.lt.s32.totalorder %s22, 1
        %s203 = scalar_select %p202, %s22, 1
        %s204 = smul.addr %s203, 4
        %s205 = scalar_lea.vmem %s3, %s204
        %s206 = smul.u32 2, %s23
        %p207 = scmp.lt.s32.totalorder %s22, 1
        %s208 = scalar_select %p207, %s22, 1
        %s209 = smul.addr %s208, 4
        %s210 = scalar_lea.vmem %s2, %s209
        %p211 = scmp.lt.s32.totalorder %s22, 1
        %s212 = scalar_select %p211, %s22, 1
        %s213 = smul.addr %s212, 4
        %s214 = scalar_lea.vmem %s3, %s213
        %p215 = scmp.eq.s32.totalorder %s23, 0
        // Predicated region
        $region33: #{tpu_custom_call.1} parent=27 // pred_check
          %p216 = pneg %p215
        $region34: #{tpu_custom_call.1} parent=27 // pred_check_branch
          %218 = sbr.rel (%p216) target = $region36
        $region35: #{tpu_custom_call.1} parent=27 // pred_region
          %vm219 = vcmask 3072
          %220 = vst.msk [vmem:[%s210] sm:$0xf] %vm219, 0.0
          %221 = vst.msk [vmem:[%s214] sm:$0xf] %vm219, 0.0
        $region36: #{tpu_custom_call.1} parent=27 // pred_fallthru
          _
        %v222 = vld [vmem:[%s180] sm:$0xff]
        %v223 = vld [vmem:[%s1] sm:$0xf]
        %225 = vset.pattern.permute.xlu0 0
        %226 = vperm.xlu0 %225, %v223
        %v227 = vpop.permute.xlu0 %226
        %v229 = vunpack.c.l.s4 839922192
        %v230 = vunpack.c.0.s8 %v229
        %v231 = vlaneseq
        %v232 = vshrl.u32 %v231, 7
        %v233 = vsub.s32 %v230, %v232
        %v234 = vrot.slane %v227, %v233
        %v236 = vsub.f32 %v222, %v234
        %v237 = vld [vmem:[%s210] sm:$0xf]
        %v239 = vcombine.high %v236, %v236
        %vm241 = vcmask 1043456
        %v242 = vsel %vm241, %v236, 0.0
        %v243 = vsel %vm241, %v239, 0.0
        %v244 = vadd.f32 %v242, %v243
        %245 = vadd.xlane.f32.xlu0 %v244
        %v246 = vpop.xlane.xlu0 %245
        %v247 = vadd.f32 %v237, %v246
        %vm248 = vcmask 3072
        %249 = vst.msk [vmem:[%s210] sm:$0xf] %vm248, %v247
        %v250 = vld [vmem:[%s214] sm:$0xf]
        %v251 = vmul.f32 %v236, %v236
        %v253 = vcombine.high %v251, %v251
        %v255 = vsel %vm241, %v251, 0.0
        %v256 = vsel %vm241, %v253, 0.0
        %v257 = vadd.f32 %v255, %v256
        %258 = vadd.xlane.f32.xlu0 %v257
        %v259 = vpop.xlane.xlu0 %258
        %v260 = vadd.f32 %v250, %v259
        %261 = vst.msk [vmem:[%s214] sm:$0xf] %vm248, %v260
        %p262 = scmp.lt.s32.totalorder %s22, 1
        %s263 = scalar_select %p262, %s22, 1
        %s264 = smul.addr %s263, 4
        %s265 = scalar_lea.vmem %s2, %s264
        %p266 = scmp.lt.s32.totalorder %s22, 1
        %s267 = scalar_select %p266, %s22, 1
        %s268 = smul.addr %s267, 4
        %s269 = scalar_lea.vmem %s3, %s268
        // Predicated region
        $region37: #{tpu_custom_call.1} parent=27 // pred_check
          %p270 = pneg %p97
        $region38: #{tpu_custom_call.1} parent=27 // pred_check_branch
          %272 = sbr.rel (%p270) target = $region40
        $region39: #{tpu_custom_call.1} parent=27 // pred_region
          _
        $region40: #{tpu_custom_call.1} parent=27 // pred_fallthru
          _
        // Predicated region
        $region41: #{tpu_custom_call.1} parent=27 // pred_check
          %p273 = pneg %p123
        $region42: #{tpu_custom_call.1} parent=27 // pred_check_branch
          %275 = sbr.rel (%p273) target = $region44
        $region43: #{tpu_custom_call.1} parent=27 // pred_region
          _
        $region44: #{tpu_custom_call.1} parent=27 // pred_fallthru
          _
      $region28: #{tpu_custom_call.1} parent=5 // pred_fallthru
        _
      %p276 = scmp.le.s32.totalorder 2, %s13
      // Predicated region
      $region45: #{tpu_custom_call.1} parent=5 // pred_check
        %p277 = pneg %p276
      $region46: #{tpu_custom_call.1} parent=5 // pred_check_branch
        %279 = sbr.rel (%p277) target = $region48
      $region47: #{tpu_custom_call.1} parent=5 // pred_region
        %s280 = ssub.s32 %s13, 2
        // Predicated region
        $region49: #{tpu_custom_call.1} parent=47 // pred_check
          %p281 = pneg %p103
        $region50: #{tpu_custom_call.1} parent=47 // pred_check_branch
          %283 = sbr.rel (%p281) target = $region52
        $region51: #{tpu_custom_call.1} parent=47 // pred_region
          %p284 = scmp.lt.s32.totalorder %s24, 1
          %s285 = scalar_select %p284, %s24, 1
          %s286 = smul.addr %s285, 4
          %s287 = scalar_lea.vmem %s2, %s286
        $region52: #{tpu_custom_call.1} parent=47 // pred_fallthru
          _
        // Predicated region
        $region53: #{tpu_custom_call.1} parent=47 // pred_check
          %p288 = pneg %p129
        $region54: #{tpu_custom_call.1} parent=47 // pred_check_branch
          %290 = sbr.rel (%p288) target = $region56
        $region55: #{tpu_custom_call.1} parent=47 // pred_region
          %p291 = scmp.lt.s32.totalorder %s24, 1
          %s292 = scalar_select %p291, %s24, 1
          %s293 = smul.addr %s292, 4
          %s294 = scalar_lea.vmem %s3, %s293
        $region56: #{tpu_custom_call.1} parent=47 // pred_fallthru
          _
      $region48: #{tpu_custom_call.1} parent=5 // pred_fallthru
        _
    $region6: #{tpu_custom_call.1} parent=1 // loop_footer
      %s17 = sadd.s32 1, %s13
    $region7: #{tpu_custom_call.1} parent=1 // loop_footer_branch
      %12 = sbr.rel target = $region3
    $region8: #{tpu_custom_call.1} parent=1 // loop_exit
      _
    %295 = vsyncpa [#allocation3], 1
    %s296 = scalar_lea.sflag [#allocation3], 1
    %297 = vsyncpa %s296, 1

</llo_original>
